<compile_context>
chip_gen: v5e
topology: v5e:2x2
jax: 0.10.0
libtpu: 0.0.40
codegen_flags: <defaults>
</compile_context>

<pallas_src>
import jax
import jax.numpy as jnp
from jax.experimental import pallas as pl
from jax.experimental.pallas import tpu as pltpu

HIDDEN = 32
INPUT = 1
OUTPUT = 1


def rnn_kernel(x_ref, h0_ref, w_ih_ref, w_hh_t_ref, b_ref, w_out_ref, b_out_ref,
               y_ref, h_out_ref, hist_ref):
    """Whole-sequence Elman RNN + output projection in one invocation.

    Refs:
      x_ref     : (B_pad, T)     inputs, time on the lane axis (input_size == 1)
      h0_ref    : (B_pad, H)     initial hidden state
      w_ih_ref  : (1, H)         W_ih (input_size == 1 -> single row)
      w_hh_t_ref: (H, H)         W_hh^T
      b_ref     : (1, H)         fused bias  b_ih + b_hh
      w_out_ref : (1, H)         W_out (output_size == 1 -> single row)
      b_out_ref : (1, 1)         output bias
      y_ref     : (B_pad, T)     per-step outputs (one lane-dense slab store)
      h_out_ref : (B_pad, H)     final hidden state
      hist_ref  : (T, B_pad, H)  VMEM scratch: hidden-state history
    """
    T = hist_ref.shape[0]

    # Loop-invariant operands loaded once.
    w_ih = w_ih_ref[...]        # (1, H)
    w_hh_t = w_hh_t_ref[...]    # (H, H)
    b = b_ref[...]              # (1, H)  (pre-fused b_ih + b_hh)

    def step(t, h):
        # Input contribution is independent of h -> scheduler can hoist it
        # off the serial h -> matmul -> tanh chain.
        x_col = x_ref[:, pl.ds(t, 1)]                       # (B_pad, 1)
        pre_t = x_col * w_ih + b                            # (B_pad, H)
        h_new = jnp.tanh(pre_t + jnp.dot(h, w_hh_t,
                                         preferred_element_type=jnp.float32))
        hist_ref[t] = h_new
        return h_new

    if T <= 256:
        # Full static unroll: static scratch indices, max LLO visibility.
        h = h0_ref[...]
        for t in range(T):
            h = step(t, h)
    else:
        # Long sequences: keep code size bounded, modest unroll.
        h = jax.lax.fori_loop(0, T, step, h0_ref[...], unroll=8)

    h_out_ref[...] = h

    # Deferred, vectorized output projection (Linear(H, 1)):
    #   y[b, t] = <hist[t, b, :], w_out> + b_out
    # computed once for all timesteps and stored as a single slab.
    hist = hist_ref[...]                                          # (T, B_pad, H)
    y_tb = jnp.sum(hist * w_out_ref[...][None, :, :], axis=-1)    # (T, B_pad)
    y_ref[...] = y_tb.T + b_out_ref[...]                          # (B_pad, T)


def rnn_forward(x_btI, h_state, params):
    """x_btI: (B, T, 1) float32 (batch_first); h_state: (1, B, H) or None.

    Returns (output (B, T, 1), h_state_out (1, B, H)) like the torch module.
    """
    B, T, I = x_btI.shape
    assert I == INPUT
    H = HIDDEN
    B_pad = ((B + 7) // 8) * 8            # pad batch to full f32 sublanes

    x_bt = x_btI.reshape(B, T).astype(jnp.float32)     # drop trailing I=1 (free)
    x_pad = jnp.pad(x_bt, ((0, B_pad - B), (0, 0)))

    if h_state is None:
        h0 = jnp.zeros((B_pad, H), jnp.float32)
    else:
        h0 = jnp.pad(h_state[0].astype(jnp.float32), ((0, B_pad - B), (0, 0)))

    w_ih_row = params["w_ih"].reshape(1, H).astype(jnp.float32)     # (H,1) -> (1,H)
    w_hh_t = params["w_hh"].T.astype(jnp.float32)                   # (H, H)
    b_fused = (params["b_ih"] + params["b_hh"]).reshape(1, H).astype(jnp.float32)
    w_out_row = params["w_out"].reshape(1, H).astype(jnp.float32)   # (1, H)
    b_out = params["b_out"].reshape(1, 1).astype(jnp.float32)       # (1, 1)

    full = lambda *shape: pl.BlockSpec(shape, lambda i: (0,) * len(shape))

    # VMEM footprint is tiny: hist is T * B_pad * H * 4 bytes (~1 KiB per step
    # at B_pad=8), so even long sequences fit well under the v7x 64 MiB budget.
    y_pad, h_last_pad = pl.pallas_call(
        rnn_kernel,
        out_shape=(
            jax.ShapeDtypeStruct((B_pad, T), jnp.float32),
            jax.ShapeDtypeStruct((B_pad, H), jnp.float32),
        ),
        grid_spec=pltpu.PrefetchScalarGridSpec(
            num_scalar_prefetch=0,
            grid=(1,),                      # recurrence lives inside the kernel
            in_specs=[
                full(B_pad, T),             # x, whole sequence resident in VMEM
                full(B_pad, H),             # h0
                full(1, H),                 # W_ih row
                full(H, H),                 # W_hh^T
                full(1, H),                 # fused bias
                full(1, H),                 # W_out row
                full(1, 1),                 # b_out
            ],
            out_specs=[
                full(B_pad, T),             # y slab (lane-dense, single store)
                full(B_pad, H),             # final hidden state
            ],
            scratch_shapes=[
                pltpu.VMEM((T, B_pad, H), jnp.float32),   # hidden-state history
            ],
        ),
        compiler_params=pltpu.CompilerParams(
            dimension_semantics=("arbitrary",)),
    )(x_pad, h0, w_ih_row, w_hh_t, b_fused, w_out_row, b_out)

    output = y_pad[:B].reshape(B, T, OUTPUT)      # already batch_first (B, T, 1)
    h_state_out = h_last_pad[:B][None, :, :]      # (1, B, H), like torch
    return output, h_state_out


def init_params(key):
    """PyTorch-style uniform(-1/sqrt(H), 1/sqrt(H)) init, deterministic."""
    ks = jax.random.split(key, 6)
    bound_rnn = 1.0 / jnp.sqrt(jnp.float32(HIDDEN))
    bound_out = 1.0 / jnp.sqrt(jnp.float32(HIDDEN))
    u = lambda k, shape, b: jax.random.uniform(k, shape, jnp.float32, -b, b)
    return {
        "w_ih": u(ks[0], (HIDDEN, INPUT), bound_rnn),
        "w_hh": u(ks[1], (HIDDEN, HIDDEN), bound_rnn),
        "b_ih": u(ks[2], (HIDDEN,), bound_rnn),
        "b_hh": u(ks[3], (HIDDEN,), bound_rnn),
        "w_out": u(ks[4], (OUTPUT, HIDDEN), bound_out),
        "b_out": u(ks[5], (OUTPUT,), bound_out),
    }


def rnn_forward_ref(x_btI, h_state, params):
    """Pure-JAX reference (lax.scan) mirroring torch.nn.RNN + Linear."""
    B, T, I = x_btI.shape
    h0 = (jnp.zeros((B, HIDDEN), jnp.float32) if h_state is None
          else h_state[0].astype(jnp.float32))

    def step(h, x_t):
        pre = (x_t @ params["w_ih"].T + params["b_ih"]
               + h @ params["w_hh"].T + params["b_hh"])
        h_new = jnp.tanh(pre)
        y = h_new @ params["w_out"].T + params["b_out"]
        return h_new, y

    x_tbI = jnp.transpose(x_btI, (1, 0, 2))
    h_last, ys = jax.lax.scan(step, h0, x_tbI)
    return jnp.transpose(ys, (1, 0, 2)), h_last[None]


if __name__ == "__main__":
    key = jax.random.PRNGKey(0)
    k_param, k_x, k_h = jax.random.split(key, 3)

    B, T = 2, 8
    params = init_params(k_param)
    x = jax.random.normal(k_x, (B, T, INPUT), jnp.float32)
    h_state = jax.random.normal(k_h, (1, B, HIDDEN), jnp.float32)

    fwd = jax.jit(rnn_forward)
    out, h_new = jax.block_until_ready(fwd(x, h_state, params))

    out_ref, h_ref = rnn_forward_ref(x, h_state, params)
    assert out.shape == (B, T, OUTPUT) and h_new.shape == (1, B, HIDDEN)
    assert jnp.allclose(out, out_ref, atol=1e-5, rtol=1e-5)
    assert jnp.allclose(h_new, h_ref, atol=1e-5, rtol=1e-5)

    print("KERNEL_OK")
</pallas_src>

<mosaic_0001>
module attributes {stable_mosaic.version = 11 : i64} {
  func.func @rnn_kernel(%arg0: i32, %arg1: memref<8x8xf32, #tpu.memory_space<vmem>>, %arg2: memref<8x32xf32, #tpu.memory_space<vmem>>, %arg3: memref<1x32xf32, #tpu.memory_space<vmem>>, %arg4: memref<32x32xf32, #tpu.memory_space<vmem>>, %arg5: memref<1x32xf32, #tpu.memory_space<vmem>>, %arg6: memref<1x32xf32, #tpu.memory_space<vmem>>, %arg7: memref<1x1xf32, #tpu.memory_space<vmem>>, %arg8: memref<8x8xf32, #tpu.memory_space<vmem>>, %arg9: memref<8x32xf32, #tpu.memory_space<vmem>>, %arg10: memref<8x8x32xf32, #tpu.memory_space<vmem>>) attributes {dimension_semantics = [#tpu.dimension_semantics<arbitrary>], iteration_bounds = array<i64: 1>, scalar_prefetch = 0 : i64, scratch_operands = 1 : i64, tpu.core_type = #tpu.core_type<tc>, window_params = [{pipeline_mode = #tpu.pipeline_mode<synchronous>, transform_indices = @transform_0, window_bounds = array<i64: 8, 8>}, {pipeline_mode = #tpu.pipeline_mode<synchronous>, transform_indices = @transform_1, window_bounds = array<i64: 8, 32>}, {pipeline_mode = #tpu.pipeline_mode<synchronous>, transform_indices = @transform_2, window_bounds = array<i64: 1, 32>}, {pipeline_mode = #tpu.pipeline_mode<synchronous>, transform_indices = @transform_3, window_bounds = array<i64: 32, 32>}, {pipeline_mode = #tpu.pipeline_mode<synchronous>, transform_indices = @transform_4, window_bounds = array<i64: 1, 32>}, {pipeline_mode = #tpu.pipeline_mode<synchronous>, transform_indices = @transform_5, window_bounds = array<i64: 1, 32>}, {pipeline_mode = #tpu.pipeline_mode<synchronous>, transform_indices = @transform_6, window_bounds = array<i64: 1, 1>}, {pipeline_mode = #tpu.pipeline_mode<synchronous>, transform_indices = @transform_7, window_bounds = array<i64: 8, 8>}, {pipeline_mode = #tpu.pipeline_mode<synchronous>, transform_indices = @transform_8, window_bounds = array<i64: 8, 32>}]} {
    %c0 = arith.constant 0 : index
    %c0_0 = arith.constant 0 : index
    %0 = vector.load %arg3[%c0, %c0_0] : memref<1x32xf32, #tpu.memory_space<vmem>>, vector<1x32xf32>
    %c0_1 = arith.constant 0 : index
    %c0_2 = arith.constant 0 : index
    %1 = vector.load %arg4[%c0_1, %c0_2] : memref<32x32xf32, #tpu.memory_space<vmem>>, vector<32x32xf32>
    %c0_3 = arith.constant 0 : index
    %c0_4 = arith.constant 0 : index
    %2 = vector.load %arg5[%c0_3, %c0_4] : memref<1x32xf32, #tpu.memory_space<vmem>>, vector<1x32xf32>
    %c0_5 = arith.constant 0 : index
    %c0_6 = arith.constant 0 : index
    %3 = vector.load %arg2[%c0_5, %c0_6] : memref<8x32xf32, #tpu.memory_space<vmem>>, vector<8x32xf32>
    %c0_7 = arith.constant 0 : index
    %c0_8 = arith.constant 0 : index
    %4 = vector.load %arg1[%c0_7, %c0_8] : memref<8x8xf32, #tpu.memory_space<vmem>>, vector<8x1xf32>
    %5 = vector.broadcast %4 : vector<8x1xf32> to vector<8x32xf32>
    %6 = vector.broadcast %0 : vector<1x32xf32> to vector<8x32xf32>
    %7 = arith.mulf %5, %6 : vector<8x32xf32>
    %8 = vector.broadcast %2 : vector<1x32xf32> to vector<8x32xf32>
    %9 = arith.addf %7, %8 : vector<8x32xf32>
    %cst = arith.constant dense<0.000000e+00> : vector<8x32xf32>
    %10 = tpu.matmul %3, %1, %cst {dimension_numbers = #tpu.dot_dimension_numbers<[1], [0], [0], [1], [0, 0, 1, 1], [], []>} : vector<8x32xf32>, vector<32x32xf32>, vector<8x32xf32> -> vector<8x32xf32>
    %11 = arith.addf %9, %10 : vector<8x32xf32>
    %12 = math.tanh %11 : vector<8x32xf32>
    %c0_9 = arith.constant 0 : index
    %c0_10 = arith.constant 0 : index
    %c0_11 = arith.constant 0 : index
    %13 = vector.load %arg10[%c0_9, %c0_10, %c0_11] : memref<8x8x32xf32, #tpu.memory_space<vmem>>, vector<1x8x32xf32>
    %14 = vector.shape_cast %13 : vector<1x8x32xf32> to vector<8x32xf32>
    %15 = vector.shape_cast %12 : vector<8x32xf32> to vector<1x8x32xf32>
    tpu.vector_store %arg10[%c0_9, %c0_10, %c0_11], %15 {strides = array<i32>} : memref<8x8x32xf32, #tpu.memory_space<vmem>>, vector<1x8x32xf32>,
    %c0_12 = arith.constant 0 : index
    %c1 = arith.constant 1 : index
    %16 = vector.load %arg1[%c0_12, %c1] : memref<8x8xf32, #tpu.memory_space<vmem>>, vector<8x1xf32>
    %17 = vector.broadcast %16 : vector<8x1xf32> to vector<8x32xf32>
    %18 = vector.broadcast %0 : vector<1x32xf32> to vector<8x32xf32>
    %19 = arith.mulf %17, %18 : vector<8x32xf32>
    %20 = vector.broadcast %2 : vector<1x32xf32> to vector<8x32xf32>
    %21 = arith.addf %19, %20 : vector<8x32xf32>
    %cst_13 = arith.constant dense<0.000000e+00> : vector<8x32xf32>
    %22 = tpu.matmul %12, %1, %cst_13 {dimension_numbers = #tpu.dot_dimension_numbers<[1], [0], [0], [1], [0, 0, 1, 1], [], []>} : vector<8x32xf32>, vector<32x32xf32>, vector<8x32xf32> -> vector<8x32xf32>
    %23 = arith.addf %21, %22 : vector<8x32xf32>
    %24 = math.tanh %23 : vector<8x32xf32>
    %c1_14 = arith.constant 1 : index
    %c0_15 = arith.constant 0 : index
    %c0_16 = arith.constant 0 : index
    %25 = vector.load %arg10[%c1_14, %c0_15, %c0_16] : memref<8x8x32xf32, #tpu.memory_space<vmem>>, vector<1x8x32xf32>
    %26 = vector.shape_cast %25 : vector<1x8x32xf32> to vector<8x32xf32>
    %27 = vector.shape_cast %24 : vector<8x32xf32> to vector<1x8x32xf32>
    tpu.vector_store %arg10[%c1_14, %c0_15, %c0_16], %27 {strides = array<i32>} : memref<8x8x32xf32, #tpu.memory_space<vmem>>, vector<1x8x32xf32>,
    %c0_17 = arith.constant 0 : index
    %c2 = arith.constant 2 : index
    %28 = vector.load %arg1[%c0_17, %c2] : memref<8x8xf32, #tpu.memory_space<vmem>>, vector<8x1xf32>
    %29 = vector.broadcast %28 : vector<8x1xf32> to vector<8x32xf32>
    %30 = vector.broadcast %0 : vector<1x32xf32> to vector<8x32xf32>
    %31 = arith.mulf %29, %30 : vector<8x32xf32>
    %32 = vector.broadcast %2 : vector<1x32xf32> to vector<8x32xf32>
    %33 = arith.addf %31, %32 : vector<8x32xf32>
    %cst_18 = arith.constant dense<0.000000e+00> : vector<8x32xf32>
    %34 = tpu.matmul %24, %1, %cst_18 {dimension_numbers = #tpu.dot_dimension_numbers<[1], [0], [0], [1], [0, 0, 1, 1], [], []>} : vector<8x32xf32>, vector<32x32xf32>, vector<8x32xf32> -> vector<8x32xf32>
    %35 = arith.addf %33, %34 : vector<8x32xf32>
    %36 = math.tanh %35 : vector<8x32xf32>
    %c2_19 = arith.constant 2 : index
    %c0_20 = arith.constant 0 : index
    %c0_21 = arith.constant 0 : index
    %37 = vector.load %arg10[%c2_19, %c0_20, %c0_21] : memref<8x8x32xf32, #tpu.memory_space<vmem>>, vector<1x8x32xf32>
    %38 = vector.shape_cast %37 : vector<1x8x32xf32> to vector<8x32xf32>
    %39 = vector.shape_cast %36 : vector<8x32xf32> to vector<1x8x32xf32>
    tpu.vector_store %arg10[%c2_19, %c0_20, %c0_21], %39 {strides = array<i32>} : memref<8x8x32xf32, #tpu.memory_space<vmem>>, vector<1x8x32xf32>,
    %c0_22 = arith.constant 0 : index
    %c3 = arith.constant 3 : index
    %40 = vector.load %arg1[%c0_22, %c3] : memref<8x8xf32, #tpu.memory_space<vmem>>, vector<8x1xf32>
    %41 = vector.broadcast %40 : vector<8x1xf32> to vector<8x32xf32>
    %42 = vector.broadcast %0 : vector<1x32xf32> to vector<8x32xf32>
    %43 = arith.mulf %41, %42 : vector<8x32xf32>
    %44 = vector.broadcast %2 : vector<1x32xf32> to vector<8x32xf32>
    %45 = arith.addf %43, %44 : vector<8x32xf32>
    %cst_23 = arith.constant dense<0.000000e+00> : vector<8x32xf32>
    %46 = tpu.matmul %36, %1, %cst_23 {dimension_numbers = #tpu.dot_dimension_numbers<[1], [0], [0], [1], [0, 0, 1, 1], [], []>} : vector<8x32xf32>, vector<32x32xf32>, vector<8x32xf32> -> vector<8x32xf32>
    %47 = arith.addf %45, %46 : vector<8x32xf32>
    %48 = math.tanh %47 : vector<8x32xf32>
    %c3_24 = arith.constant 3 : index
    %c0_25 = arith.constant 0 : index
    %c0_26 = arith.constant 0 : index
    %49 = vector.load %arg10[%c3_24, %c0_25, %c0_26] : memref<8x8x32xf32, #tpu.memory_space<vmem>>, vector<1x8x32xf32>
    %50 = vector.shape_cast %49 : vector<1x8x32xf32> to vector<8x32xf32>
    %51 = vector.shape_cast %48 : vector<8x32xf32> to vector<1x8x32xf32>
    tpu.vector_store %arg10[%c3_24, %c0_25, %c0_26], %51 {strides = array<i32>} : memref<8x8x32xf32, #tpu.memory_space<vmem>>, vector<1x8x32xf32>,
    %c0_27 = arith.constant 0 : index
    %c4 = arith.constant 4 : index
    %52 = vector.load %arg1[%c0_27, %c4] : memref<8x8xf32, #tpu.memory_space<vmem>>, vector<8x1xf32>
    %53 = vector.broadcast %52 : vector<8x1xf32> to vector<8x32xf32>
    %54 = vector.broadcast %0 : vector<1x32xf32> to vector<8x32xf32>
    %55 = arith.mulf %53, %54 : vector<8x32xf32>
    %56 = vector.broadcast %2 : vector<1x32xf32> to vector<8x32xf32>
    %57 = arith.addf %55, %56 : vector<8x32xf32>
    %cst_28 = arith.constant dense<0.000000e+00> : vector<8x32xf32>
    %58 = tpu.matmul %48, %1, %cst_28 {dimension_numbers = #tpu.dot_dimension_numbers<[1], [0], [0], [1], [0, 0, 1, 1], [], []>} : vector<8x32xf32>, vector<32x32xf32>, vector<8x32xf32> -> vector<8x32xf32>
    %59 = arith.addf %57, %58 : vector<8x32xf32>
    %60 = math.tanh %59 : vector<8x32xf32>
    %c4_29 = arith.constant 4 : index
    %c0_30 = arith.constant 0 : index
    %c0_31 = arith.constant 0 : index
    %61 = vector.load %arg10[%c4_29, %c0_30, %c0_31] : memref<8x8x32xf32, #tpu.memory_space<vmem>>, vector<1x8x32xf32>
    %62 = vector.shape_cast %61 : vector<1x8x32xf32> to vector<8x32xf32>
    %63 = vector.shape_cast %60 : vector<8x32xf32> to vector<1x8x32xf32>
    tpu.vector_store %arg10[%c4_29, %c0_30, %c0_31], %63 {strides = array<i32>} : memref<8x8x32xf32, #tpu.memory_space<vmem>>, vector<1x8x32xf32>,
    %c0_32 = arith.constant 0 : index
    %c5 = arith.constant 5 : index
    %64 = vector.load %arg1[%c0_32, %c5] : memref<8x8xf32, #tpu.memory_space<vmem>>, vector<8x1xf32>
    %65 = vector.broadcast %64 : vector<8x1xf32> to vector<8x32xf32>
    %66 = vector.broadcast %0 : vector<1x32xf32> to vector<8x32xf32>
    %67 = arith.mulf %65, %66 : vector<8x32xf32>
    %68 = vector.broadcast %2 : vector<1x32xf32> to vector<8x32xf32>
    %69 = arith.addf %67, %68 : vector<8x32xf32>
    %cst_33 = arith.constant dense<0.000000e+00> : vector<8x32xf32>
    %70 = tpu.matmul %60, %1, %cst_33 {dimension_numbers = #tpu.dot_dimension_numbers<[1], [0], [0], [1], [0, 0, 1, 1], [], []>} : vector<8x32xf32>, vector<32x32xf32>, vector<8x32xf32> -> vector<8x32xf32>
    %71 = arith.addf %69, %70 : vector<8x32xf32>
    %72 = math.tanh %71 : vector<8x32xf32>
    %c5_34 = arith.constant 5 : index
    %c0_35 = arith.constant 0 : index
    %c0_36 = arith.constant 0 : index
    %73 = vector.load %arg10[%c5_34, %c0_35, %c0_36] : memref<8x8x32xf32, #tpu.memory_space<vmem>>, vector<1x8x32xf32>
    %74 = vector.shape_cast %73 : vector<1x8x32xf32> to vector<8x32xf32>
    %75 = vector.shape_cast %72 : vector<8x32xf32> to vector<1x8x32xf32>
    tpu.vector_store %arg10[%c5_34, %c0_35, %c0_36], %75 {strides = array<i32>} : memref<8x8x32xf32, #tpu.memory_space<vmem>>, vector<1x8x32xf32>,
    %c0_37 = arith.constant 0 : index
    %c6 = arith.constant 6 : index
    %76 = vector.load %arg1[%c0_37, %c6] : memref<8x8xf32, #tpu.memory_space<vmem>>, vector<8x1xf32>
    %77 = vector.broadcast %76 : vector<8x1xf32> to vector<8x32xf32>
    %78 = vector.broadcast %0 : vector<1x32xf32> to vector<8x32xf32>
    %79 = arith.mulf %77, %78 : vector<8x32xf32>
    %80 = vector.broadcast %2 : vector<1x32xf32> to vector<8x32xf32>
    %81 = arith.addf %79, %80 : vector<8x32xf32>
    %cst_38 = arith.constant dense<0.000000e+00> : vector<8x32xf32>
    %82 = tpu.matmul %72, %1, %cst_38 {dimension_numbers = #tpu.dot_dimension_numbers<[1], [0], [0], [1], [0, 0, 1, 1], [], []>} : vector<8x32xf32>, vector<32x32xf32>, vector<8x32xf32> -> vector<8x32xf32>
    %83 = arith.addf %81, %82 : vector<8x32xf32>
    %84 = math.tanh %83 : vector<8x32xf32>
    %c6_39 = arith.constant 6 : index
    %c0_40 = arith.constant 0 : index
    %c0_41 = arith.constant 0 : index
    %85 = vector.load %arg10[%c6_39, %c0_40, %c0_41] : memref<8x8x32xf32, #tpu.memory_space<vmem>>, vector<1x8x32xf32>
    %86 = vector.shape_cast %85 : vector<1x8x32xf32> to vector<8x32xf32>
    %87 = vector.shape_cast %84 : vector<8x32xf32> to vector<1x8x32xf32>
    tpu.vector_store %arg10[%c6_39, %c0_40, %c0_41], %87 {strides = array<i32>} : memref<8x8x32xf32, #tpu.memory_space<vmem>>, vector<1x8x32xf32>,
    %c0_42 = arith.constant 0 : index
    %c7 = arith.constant 7 : index
    %88 = vector.load %arg1[%c0_42, %c7] : memref<8x8xf32, #tpu.memory_space<vmem>>, vector<8x1xf32>
    %89 = vector.broadcast %88 : vector<8x1xf32> to vector<8x32xf32>
    %90 = vector.broadcast %0 : vector<1x32xf32> to vector<8x32xf32>
    %91 = arith.mulf %89, %90 : vector<8x32xf32>
    %92 = vector.broadcast %2 : vector<1x32xf32> to vector<8x32xf32>
    %93 = arith.addf %91, %92 : vector<8x32xf32>
    %cst_43 = arith.constant dense<0.000000e+00> : vector<8x32xf32>
    %94 = tpu.matmul %84, %1, %cst_43 {dimension_numbers = #tpu.dot_dimension_numbers<[1], [0], [0], [1], [0, 0, 1, 1], [], []>} : vector<8x32xf32>, vector<32x32xf32>, vector<8x32xf32> -> vector<8x32xf32>
    %95 = arith.addf %93, %94 : vector<8x32xf32>
    %96 = math.tanh %95 : vector<8x32xf32>
    %c7_44 = arith.constant 7 : index
    %c0_45 = arith.constant 0 : index
    %c0_46 = arith.constant 0 : index
    %97 = vector.load %arg10[%c7_44, %c0_45, %c0_46] : memref<8x8x32xf32, #tpu.memory_space<vmem>>, vector<1x8x32xf32>
    %98 = vector.shape_cast %97 : vector<1x8x32xf32> to vector<8x32xf32>
    %99 = vector.shape_cast %96 : vector<8x32xf32> to vector<1x8x32xf32>
    tpu.vector_store %arg10[%c7_44, %c0_45, %c0_46], %99 {strides = array<i32>} : memref<8x8x32xf32, #tpu.memory_space<vmem>>, vector<1x8x32xf32>,
    %c0_47 = arith.constant 0 : index
    %c0_48 = arith.constant 0 : index
    %100 = vector.load %arg9[%c0_47, %c0_48] : memref<8x32xf32, #tpu.memory_space<vmem>>, vector<8x32xf32>
    tpu.vector_store %arg9[%c0_47, %c0_48], %96 {strides = array<i32>} : memref<8x32xf32, #tpu.memory_space<vmem>>, vector<8x32xf32>,
    %c0_49 = arith.constant 0 : index
    %c0_50 = arith.constant 0 : index
    %c0_51 = arith.constant 0 : index
    %101 = vector.load %arg10[%c0_49, %c0_50, %c0_51] : memref<8x8x32xf32, #tpu.memory_space<vmem>>, vector<8x8x32xf32>
    %c0_52 = arith.constant 0 : index
    %c0_53 = arith.constant 0 : index
    %102 = vector.load %arg6[%c0_52, %c0_53] : memref<1x32xf32, #tpu.memory_space<vmem>>, vector<1x32xf32>
    %103 = vector.shape_cast %102 : vector<1x32xf32> to vector<1x1x32xf32>
    %104 = vector.broadcast %103 : vector<1x1x32xf32> to vector<8x8x32xf32>
    %105 = arith.mulf %101, %104 : vector<8x8x32xf32>
    %cst_54 = arith.constant dense<0.000000e+00> : vector<8x8xf32>
    %106 = vector.multi_reduction <add>, %105, %cst_54 [2] : vector<8x8x32xf32> to vector<8x8xf32>
    %107 = tpu.transpose %106, [1, 0] : vector<8x8xf32> -> vector<8x8xf32>
    %c0_55 = arith.constant 0 : index
    %c0_56 = arith.constant 0 : index
    %108 = vector.load %arg7[%c0_55, %c0_56] : memref<1x1xf32, #tpu.memory_space<vmem>>, vector<1x1xf32>
    %109 = vector.broadcast %108 : vector<1x1xf32> to vector<8x8xf32>
    %110 = arith.addf %107, %109 : vector<8x8xf32>
    %c0_57 = arith.constant 0 : index
    %c0_58 = arith.constant 0 : index
    %111 = vector.load %arg8[%c0_57, %c0_58] : memref<8x8xf32, #tpu.memory_space<vmem>>, vector<8x8xf32>
    tpu.vector_store %arg8[%c0_57, %c0_58], %110 {strides = array<i32>} : memref<8x8xf32, #tpu.memory_space<vmem>>, vector<8x8xf32>,
    return
  }
  func.func @transform_0(%arg0: i32) -> (i32, i32) {
    %c0_i32 = arith.constant 0 : i32
    %c0_i32_0 = arith.constant 0 : i32
    %c0_i32_1 = arith.constant 0 : i32
    return %c0_i32, %c0_i32_0 : i32, i32
  }
  func.func @transform_1(%arg0: i32) -> (i32, i32) {
    %c0_i32 = arith.constant 0 : i32
    %c0_i32_0 = arith.constant 0 : i32
    %c0_i32_1 = arith.constant 0 : i32
    return %c0_i32, %c0_i32_0 : i32, i32
  }
  func.func @transform_2(%arg0: i32) -> (i32, i32) {
    %c0_i32 = arith.constant 0 : i32
    %c0_i32_0 = arith.constant 0 : i32
    %c0_i32_1 = arith.constant 0 : i32
    return %c0_i32, %c0_i32_0 : i32, i32
  }
  func.func @transform_3(%arg0: i32) -> (i32, i32) {
    %c0_i32 = arith.constant 0 : i32
    %c0_i32_0 = arith.constant 0 : i32
    %c0_i32_1 = arith.constant 0 : i32
    return %c0_i32, %c0_i32_0 : i32, i32
  }
  func.func @transform_4(%arg0: i32) -> (i32, i32) {
    %c0_i32 = arith.constant 0 : i32
    %c0_i32_0 = arith.constant 0 : i32
    %c0_i32_1 = arith.constant 0 : i32
    return %c0_i32, %c0_i32_0 : i32, i32
  }
  func.func @transform_5(%arg0: i32) -> (i32, i32) {
    %c0_i32 = arith.constant 0 : i32
    %c0_i32_0 = arith.constant 0 : i32
    %c0_i32_1 = arith.constant 0 : i32
    return %c0_i32, %c0_i32_0 : i32, i32
  }
  func.func @transform_6(%arg0: i32) -> (i32, i32) {
    %c0_i32 = arith.constant 0 : i32
    %c0_i32_0 = arith.constant 0 : i32
    %c0_i32_1 = arith.constant 0 : i32
    return %c0_i32, %c0_i32_0 : i32, i32
  }
  func.func @transform_7(%arg0: i32) -> (i32, i32) {
    %c0_i32 = arith.constant 0 : i32
    %c0_i32_0 = arith.constant 0 : i32
    %c0_i32_1 = arith.constant 0 : i32
    return %c0_i32, %c0_i32_0 : i32, i32
  }
  func.func @transform_8(%arg0: i32) -> (i32, i32) {
    %c0_i32 = arith.constant 0 : i32
    %c0_i32_0 = arith.constant 0 : i32
    %c0_i32_1 = arith.constant 0 : i32
    return %c0_i32, %c0_i32_0 : i32, i32
  }
}

</mosaic_0001>

<llo_original>
// kernel: rnn_forward.1
$region0: #{rnn_forward.1}
  #allocation0 [shape = 'u32[]', space=smem, size = 0x4, offset = 0x4, fixed_abs, tag = 'smem constant byte address 0x4 - core index']
  #allocation1 [shape = 'u32[72,128]{1,0:T(1,128)}', space=vmem, size = 0x9000, scoped, tag = 'internal scratch']
  #allocation2 [shape = 'f32[8,8,32]{2,1,0:T(8,128)}', space=vmem, size = 0x8000, scoped, tag = 'scratch operand']
  #allocation3 [shape = 'f32[1,1]{1,0:T(1,128)S(1)}', space=vmem, size = 0x200, scoped, tag = 'scoped memory for rnn_forward.1']
  %s0 = inlined_call_operand.vmem [shape: f32[8,8], index: 0, kind: input, shape index: {}]
  %s1 = inlined_call_operand.vmem [shape: f32[8,32], index: 1, kind: input, shape index: {}]
  %s2 = inlined_call_operand.vmem [shape: f32[1,32], index: 2, kind: input, shape index: {}]
  %s3 = inlined_call_operand.vmem [shape: f32[32,32], index: 3, kind: input, shape index: {}]
  %s4 = inlined_call_operand.vmem [shape: f32[1,32], index: 4, kind: input, shape index: {}]
  %s5 = inlined_call_operand.vmem [shape: f32[1,32], index: 5, kind: input, shape index: {}]
  %s6 = inlined_call_operand.<no memory space> [shape: f32[1,1], index: 6, kind: input, shape index: {}]
  %s7 = inlined_call_operand.vmem [shape: f32[8,8], index: 7, kind: output, shape index: {0}]
  %s8 = inlined_call_operand.vmem [shape: f32[8,32], index: 8, kind: output, shape index: {1}]
  %9 = xla_tuple %s7, %s8
  %s10 = sld [smem:[#allocation0]]
  $region46: #{rnn_forward.1} parent=0
    _
  %s12 = ssub.s32 1, %s10
  %s13 = scalar_select 0, %s12, %s10
  %v14 = vstv %s6
  %15 = vst [vmem:[#allocation3] sm:$0x1] %v14
  // Predicated region
  $region2: #{rnn_forward.1} parent=0 // pred_check
    _
  $region3: #{rnn_forward.1} parent=0 // pred_check_branch
    %17 = sbr.rel (0) target = $region5
  $region4: #{rnn_forward.1} parent=0 // pred_region
    _
  $region5: #{rnn_forward.1} parent=0 // pred_fallthru
    _
  // Predicated region
  $region6: #{rnn_forward.1} parent=0 // pred_check
    _
  $region7: #{rnn_forward.1} parent=0 // pred_check_branch
    %19 = sbr.rel (0) target = $region9
  $region8: #{rnn_forward.1} parent=0 // pred_region
    _
  $region9: #{rnn_forward.1} parent=0 // pred_fallthru
    _
  // Predicated region
  $region10: #{rnn_forward.1} parent=0 // pred_check
    _
  $region11: #{rnn_forward.1} parent=0 // pred_check_branch
    %21 = sbr.rel (0) target = $region13
  $region12: #{rnn_forward.1} parent=0 // pred_region
    _
  $region13: #{rnn_forward.1} parent=0 // pred_fallthru
    _
  // Predicated region
  $region14: #{rnn_forward.1} parent=0 // pred_check
    _
  $region15: #{rnn_forward.1} parent=0 // pred_check_branch
    %23 = sbr.rel (0) target = $region17
  $region16: #{rnn_forward.1} parent=0 // pred_region
    _
  $region17: #{rnn_forward.1} parent=0 // pred_fallthru
    _
  // Predicated region
  $region18: #{rnn_forward.1} parent=0 // pred_check
    _
  $region19: #{rnn_forward.1} parent=0 // pred_check_branch
    %25 = sbr.rel (0) target = $region21
  $region20: #{rnn_forward.1} parent=0 // pred_region
    _
  $region21: #{rnn_forward.1} parent=0 // pred_fallthru
    _
  // Predicated region
  $region22: #{rnn_forward.1} parent=0 // pred_check
    _
  $region23: #{rnn_forward.1} parent=0 // pred_check_branch
    %27 = sbr.rel (0) target = $region25
  $region24: #{rnn_forward.1} parent=0 // pred_region
    _
  $region25: #{rnn_forward.1} parent=0 // pred_fallthru
    _
  // Predicated region
  $region26: #{rnn_forward.1} parent=0 // pred_check
    _
  $region27: #{rnn_forward.1} parent=0 // pred_check_branch
    %29 = sbr.rel (0) target = $region29
  $region28: #{rnn_forward.1} parent=0 // pred_region
    _
  $region29: #{rnn_forward.1} parent=0 // pred_fallthru
    _
  %v30 = vld [vmem:[%s2] sm:$0x1]
  %v31 = vld [vmem:[%s3] sm:$0xff]
  %v32 = vld [vmem:[%s3 + $0x8] sm:$0xff]
  %v33 = vld [vmem:[%s3 + $0x10] sm:$0xff]
  %v34 = vld [vmem:[%s3 + $0x18] sm:$0xff]
  %v35 = vld [vmem:[%s4] sm:$0x1]
  %v36 = vld [vmem:[%s1] sm:$0xff]
  %v37 = vld [vmem:[%s0] sm:$0xff]
  %39 = vset.pattern.permute.xlu0 0
  %40 = vperm.xlu0 %39, %v37
  %v41 = vpop.permute.xlu0 %40
  %v44 = vperm.slane %v30, 0
  %v46 = vmul.f32 %v41, %v44
  %v48 = vperm.slane %v35, 0
  %v50 = vadd.f32 %v46, %v48
  %vm51 = vcmask 261120
  %v53 = vsel %vm51, %v36, 0
  %55 = vmatpush.msra.mxu0 0.0
  %56 = vmatpush.msra.mxu0 0.0
  %57 = vmatpush.msra.mxu0 0.0
  %58 = vmatpush.msra.mxu0 0.0
  %59 = vmatpush.msra.mxu0 0.0
  %60 = vmatpush.msra.mxu0 0.0
  %61 = vmatpush.msra.mxu0 0.0
  %62 = vmatpush.msra.mxu0 0.0
  %63 = vmatpush.msra.mxu0 0.0
  %64 = vmatpush.msra.mxu0 0.0
  %65 = vmatpush.msra.mxu0 0.0
  %66 = vmatpush.msra.mxu0 0.0
  %67 = vmatpush.msra.mxu0 %v34
  %68 = vmatpush.msra.mxu0 %v33
  %69 = vmatpush.msra.mxu0 %v32
  %70 = vmatpush.msra.mxu0 %v31
  %71 = vmatmul.f32.gmra.mxu0 %v53
  %v72 = vpop.f32.mrf.mxu0
  %v73 = vadd.f32 0.0, %v72
  %74 = vdwg.mxu0
  %v75 = vadd.f32 %v50, %v73
  %v76 = vtanh.pop %v75
  %77 = vst.msk [vmem:[#allocation2] sm:$0xff] %vm51, %v76
  %v78 = vld [vmem:[%s0] sm:$0xff]
  %80 = vset.pattern.permute.xlu0 1
  %81 = vperm.xlu0 %80, %v78
  %v82 = vpop.permute.xlu0 %81
  %v84 = vmul.f32 %v82, %v44
  %v85 = vadd.f32 %v84, %v48
  %v87 = vsel %vm51, %v76, 0
  %89 = vmatpush.msra.mxu0 0.0
  %90 = vmatpush.msra.mxu0 0.0
  %91 = vmatpush.msra.mxu0 0.0
  %92 = vmatpush.msra.mxu0 0.0
  %93 = vmatpush.msra.mxu0 0.0
  %94 = vmatpush.msra.mxu0 0.0
  %95 = vmatpush.msra.mxu0 0.0
  %96 = vmatpush.msra.mxu0 0.0
  %97 = vmatpush.msra.mxu0 0.0
  %98 = vmatpush.msra.mxu0 0.0
  %99 = vmatpush.msra.mxu0 0.0
  %100 = vmatpush.msra.mxu0 0.0
  %101 = vmatpush.msra.mxu0 %v34
  %102 = vmatpush.msra.mxu0 %v33
  %103 = vmatpush.msra.mxu0 %v32
  %104 = vmatpush.msra.mxu0 %v31
  %105 = vmatmul.f32.gmra.mxu0 %v87
  %v106 = vpop.f32.mrf.mxu0
  %v107 = vadd.f32 0.0, %v106
  %108 = vdwg.mxu0
  %v109 = vadd.f32 %v85, %v107
  %v110 = vtanh.pop %v109
  %s111 = scalar_lea.vmem [#allocation2], 8
  %112 = vst.msk [vmem:[%s111] sm:$0xff] %vm51, %v110
  %v113 = vld [vmem:[%s0] sm:$0xff]
  %115 = vset.pattern.permute.xlu0 2
  %116 = vperm.xlu0 %115, %v113
  %v117 = vpop.permute.xlu0 %116
  %v119 = vmul.f32 %v117, %v44
  %v120 = vadd.f32 %v119, %v48
  %v122 = vsel %vm51, %v110, 0
  %124 = vmatpush.msra.mxu0 0.0
  %125 = vmatpush.msra.mxu0 0.0
  %126 = vmatpush.msra.mxu0 0.0
  %127 = vmatpush.msra.mxu0 0.0
  %128 = vmatpush.msra.mxu0 0.0
  %129 = vmatpush.msra.mxu0 0.0
  %130 = vmatpush.msra.mxu0 0.0
  %131 = vmatpush.msra.mxu0 0.0
  %132 = vmatpush.msra.mxu0 0.0
  %133 = vmatpush.msra.mxu0 0.0
  %134 = vmatpush.msra.mxu0 0.0
  %135 = vmatpush.msra.mxu0 0.0
  %136 = vmatpush.msra.mxu0 %v34
  %137 = vmatpush.msra.mxu0 %v33
  %138 = vmatpush.msra.mxu0 %v32
  %139 = vmatpush.msra.mxu0 %v31
  %140 = vmatmul.f32.gmra.mxu0 %v122
  %v141 = vpop.f32.mrf.mxu0
  %v142 = vadd.f32 0.0, %v141
  %143 = vdwg.mxu0
  %v144 = vadd.f32 %v120, %v142
  %v145 = vtanh.pop %v144
  %s146 = scalar_lea.vmem [#allocation2], 16
  %147 = vst.msk [vmem:[%s146] sm:$0xff] %vm51, %v145
  %v148 = vld [vmem:[%s0] sm:$0xff]
  %150 = vset.pattern.permute.xlu0 3
  %151 = vperm.xlu0 %150, %v148
  %v152 = vpop.permute.xlu0 %151
  %v154 = vmul.f32 %v152, %v44
  %v155 = vadd.f32 %v154, %v48
  %v157 = vsel %vm51, %v145, 0
  %159 = vmatpush.msra.mxu0 0.0
  %160 = vmatpush.msra.mxu0 0.0
  %161 = vmatpush.msra.mxu0 0.0
  %162 = vmatpush.msra.mxu0 0.0
  %163 = vmatpush.msra.mxu0 0.0
  %164 = vmatpush.msra.mxu0 0.0
  %165 = vmatpush.msra.mxu0 0.0
  %166 = vmatpush.msra.mxu0 0.0
  %167 = vmatpush.msra.mxu0 0.0
  %168 = vmatpush.msra.mxu0 0.0
  %169 = vmatpush.msra.mxu0 0.0
  %170 = vmatpush.msra.mxu0 0.0
  %171 = vmatpush.msra.mxu0 %v34
  %172 = vmatpush.msra.mxu0 %v33
  %173 = vmatpush.msra.mxu0 %v32
  %174 = vmatpush.msra.mxu0 %v31
  %175 = vmatmul.f32.gmra.mxu0 %v157
  %v176 = vpop.f32.mrf.mxu0
  %v177 = vadd.f32 0.0, %v176
  %178 = vdwg.mxu0
  %v179 = vadd.f32 %v155, %v177
  %v180 = vtanh.pop %v179
  %s181 = scalar_lea.vmem [#allocation2], 24
  %182 = vst.msk [vmem:[%s181] sm:$0xff] %vm51, %v180
  %v183 = vld [vmem:[%s0] sm:$0xff]
  %185 = vset.pattern.permute.xlu0 4
  %186 = vperm.xlu0 %185, %v183
  %v187 = vpop.permute.xlu0 %186
  %v189 = vmul.f32 %v187, %v44
  %v190 = vadd.f32 %v189, %v48
  %v192 = vsel %vm51, %v180, 0
  %194 = vmatpush.msra.mxu0 0.0
  %195 = vmatpush.msra.mxu0 0.0
  %196 = vmatpush.msra.mxu0 0.0
  %197 = vmatpush.msra.mxu0 0.0
  %198 = vmatpush.msra.mxu0 0.0
  %199 = vmatpush.msra.mxu0 0.0
  %200 = vmatpush.msra.mxu0 0.0
  %201 = vmatpush.msra.mxu0 0.0
  %202 = vmatpush.msra.mxu0 0.0
  %203 = vmatpush.msra.mxu0 0.0
  %204 = vmatpush.msra.mxu0 0.0
  %205 = vmatpush.msra.mxu0 0.0
  %206 = vmatpush.msra.mxu0 %v34
  %207 = vmatpush.msra.mxu0 %v33
  %208 = vmatpush.msra.mxu0 %v32
  %209 = vmatpush.msra.mxu0 %v31
  %210 = vmatmul.f32.gmra.mxu0 %v192
  %v211 = vpop.f32.mrf.mxu0
  %v212 = vadd.f32 0.0, %v211
  %213 = vdwg.mxu0
  %v214 = vadd.f32 %v190, %v212
  %v215 = vtanh.pop %v214
  %s216 = scalar_lea.vmem [#allocation2], 32
  %217 = vst.msk [vmem:[%s216] sm:$0xff] %vm51, %v215
  %v218 = vld [vmem:[%s0] sm:$0xff]
  %220 = vset.pattern.permute.xlu0 5
  %221 = vperm.xlu0 %220, %v218
  %v222 = vpop.permute.xlu0 %221
  %v224 = vmul.f32 %v222, %v44
  %v225 = vadd.f32 %v224, %v48
  %v227 = vsel %vm51, %v215, 0
  %229 = vmatpush.msra.mxu0 0.0
  %230 = vmatpush.msra.mxu0 0.0
  %231 = vmatpush.msra.mxu0 0.0
  %232 = vmatpush.msra.mxu0 0.0
  %233 = vmatpush.msra.mxu0 0.0
  %234 = vmatpush.msra.mxu0 0.0
  %235 = vmatpush.msra.mxu0 0.0
  %236 = vmatpush.msra.mxu0 0.0
  %237 = vmatpush.msra.mxu0 0.0
  %238 = vmatpush.msra.mxu0 0.0
  %239 = vmatpush.msra.mxu0 0.0
  %240 = vmatpush.msra.mxu0 0.0
  %241 = vmatpush.msra.mxu0 %v34
  %242 = vmatpush.msra.mxu0 %v33
  %243 = vmatpush.msra.mxu0 %v32
  %244 = vmatpush.msra.mxu0 %v31
  %245 = vmatmul.f32.gmra.mxu0 %v227
  %v246 = vpop.f32.mrf.mxu0
  %v247 = vadd.f32 0.0, %v246
  %248 = vdwg.mxu0
  %v249 = vadd.f32 %v225, %v247
  %v250 = vtanh.pop %v249
  %s251 = scalar_lea.vmem [#allocation2], 40
  %252 = vst.msk [vmem:[%s251] sm:$0xff] %vm51, %v250
  %v253 = vld [vmem:[%s0] sm:$0xff]
  %255 = vset.pattern.permute.xlu0 6
  %256 = vperm.xlu0 %255, %v253
  %v257 = vpop.permute.xlu0 %256
  %v259 = vmul.f32 %v257, %v44
  %v260 = vadd.f32 %v259, %v48
  %v262 = vsel %vm51, %v250, 0
  %264 = vmatpush.msra.mxu0 0.0
  %265 = vmatpush.msra.mxu0 0.0
  %266 = vmatpush.msra.mxu0 0.0
  %267 = vmatpush.msra.mxu0 0.0
  %268 = vmatpush.msra.mxu0 0.0
  %269 = vmatpush.msra.mxu0 0.0
  %270 = vmatpush.msra.mxu0 0.0
  %271 = vmatpush.msra.mxu0 0.0
  %272 = vmatpush.msra.mxu0 0.0
  %273 = vmatpush.msra.mxu0 0.0
  %274 = vmatpush.msra.mxu0 0.0
  %275 = vmatpush.msra.mxu0 0.0
  %276 = vmatpush.msra.mxu0 %v34
  %277 = vmatpush.msra.mxu0 %v33
  %278 = vmatpush.msra.mxu0 %v32
  %279 = vmatpush.msra.mxu0 %v31
  %280 = vmatmul.f32.gmra.mxu0 %v262
  %v281 = vpop.f32.mrf.mxu0
  %v282 = vadd.f32 0.0, %v281
  %283 = vdwg.mxu0
  %v284 = vadd.f32 %v260, %v282
  %v285 = vtanh.pop %v284
  %s286 = scalar_lea.vmem [#allocation2], 48
  %287 = vst.msk [vmem:[%s286] sm:$0xff] %vm51, %v285
  %v288 = vld [vmem:[%s0] sm:$0xff]
  %290 = vset.pattern.permute.xlu0 7
  %291 = vperm.xlu0 %290, %v288
  %v292 = vpop.permute.xlu0 %291
  %v294 = vmul.f32 %v292, %v44
  %v295 = vadd.f32 %v294, %v48
  %v297 = vsel %vm51, %v285, 0
  %299 = vmatpush.msra.mxu0 0.0
  %300 = vmatpush.msra.mxu0 0.0
  %301 = vmatpush.msra.mxu0 0.0
  %302 = vmatpush.msra.mxu0 0.0
  %303 = vmatpush.msra.mxu0 0.0
  %304 = vmatpush.msra.mxu0 0.0
  %305 = vmatpush.msra.mxu0 0.0
  %306 = vmatpush.msra.mxu0 0.0
  %307 = vmatpush.msra.mxu0 0.0
  %308 = vmatpush.msra.mxu0 0.0
  %309 = vmatpush.msra.mxu0 0.0
  %310 = vmatpush.msra.mxu0 0.0
  %311 = vmatpush.msra.mxu0 %v34
  %312 = vmatpush.msra.mxu0 %v33
  %313 = vmatpush.msra.mxu0 %v32
  %314 = vmatpush.msra.mxu0 %v31
  %315 = vmatmul.f32.gmra.mxu0 %v297
  %v316 = vpop.f32.mrf.mxu0
  %v317 = vadd.f32 0.0, %v316
  %318 = vdwg.mxu0
  %v319 = vadd.f32 %v295, %v317
  %v320 = vtanh.pop %v319
  %s321 = scalar_lea.vmem [#allocation2], 56
  %322 = vst.msk [vmem:[%s321] sm:$0xff] %vm51, %v320
  %323 = vst.msk [vmem:[%s8] sm:$0xff] %vm51, %v320
  %v324 = vld [vmem:[#allocation2] sm:$0xff]
  %v325 = vld [vmem:[#allocation2 + $0x8] sm:$0xff]
  %v326 = vld [vmem:[#allocation2 + $0x10] sm:$0xff]
  %v327 = vld [vmem:[#allocation2 + $0x18] sm:$0xff]
  %v328 = vld [vmem:[#allocation2 + $0x20] sm:$0xff]
  %v329 = vld [vmem:[#allocation2 + $0x28] sm:$0xff]
  %v330 = vld [vmem:[#allocation2 + $0x30] sm:$0xff]
  %v331 = vld [vmem:[#allocation2 + $0x38] sm:$0xff]
  %v332 = vld [vmem:[%s5] sm:$0x1]
  %v334 = vperm.slane %v332, 0
  %v336 = vmul.f32 %v324, %v334
  %v337 = vmul.f32 %v325, %v334
  %v338 = vmul.f32 %v326, %v334
  %v339 = vmul.f32 %v327, %v334
  %v340 = vmul.f32 %v328, %v334
  %v341 = vmul.f32 %v329, %v334
  %v342 = vmul.f32 %v330, %v334
  %v343 = vmul.f32 %v331, %v334
  %v344 = vsel %vm51, %v336, 0.0
  %345 = vadd.xlane.f32.xlu0 %v344
  %v346 = vpop.xlane.xlu0 %345
  %v347 = vsel %vm51, %v337, 0.0
  %348 = vadd.xlane.f32.xlu0 %v347
  %v349 = vpop.xlane.xlu0 %348
  %v350 = vsel %vm51, %v338, 0.0
  %351 = vadd.xlane.f32.xlu0 %v350
  %v352 = vpop.xlane.xlu0 %351
  %v353 = vsel %vm51, %v339, 0.0
  %354 = vadd.xlane.f32.xlu0 %v353
  %v355 = vpop.xlane.xlu0 %354
  %v356 = vsel %vm51, %v340, 0.0
  %357 = vadd.xlane.f32.xlu0 %v356
  %v358 = vpop.xlane.xlu0 %357
  %v359 = vsel %vm51, %v341, 0.0
  %360 = vadd.xlane.f32.xlu0 %v359
  %v361 = vpop.xlane.xlu0 %360
  %v362 = vsel %vm51, %v342, 0.0
  %363 = vadd.xlane.f32.xlu0 %v362
  %v364 = vpop.xlane.xlu0 %363
  %v365 = vsel %vm51, %v343, 0.0
  %366 = vadd.xlane.f32.xlu0 %v365
  %v367 = vpop.xlane.xlu0 %366
  %v376 = vlaneseq
  %v377 = vand.u32 %v376, 127
  %v378 = vperm.slane %v346, %v377
  %v379 = vperm.slane %v349, %v377
  %v380 = vperm.slane %v352, %v377
  %v381 = vperm.slane %v355, %v377
  %v382 = vperm.slane %v358, %v377
  %v383 = vperm.slane %v361, %v377
  %v384 = vperm.slane %v364, %v377
  %v385 = vperm.slane %v367, %v377
  %vm386 = vcmask 1041409
  %v387 = vsel %vm386, %v379, %v378
  %vm388 = vcmask 1042434
  %v389 = vsel %vm388, %v380, %v387
  %vm390 = vcmask 1043459
  %v391 = vsel %vm390, %v381, %v389
  %vm392 = vcmask 1044484
  %v393 = vsel %vm392, %v382, %v391
  %vm394 = vcmask 1045509
  %v395 = vsel %vm394, %v383, %v393
  %vm396 = vcmask 1046534
  %v397 = vsel %vm396, %v384, %v395
  %vm398 = vcmask 1047559
  %v399 = vsel %vm398, %v385, %v397
  %401 = vxpose.xlu0.b32.start [1/16] %v399, 128
  %402 = vxpose.xlu0.b32.cont [2/16] 0.0, 128
  %403 = vxpose.xlu0.b32.cont [3/16] 0.0, 128
  %404 = vxpose.xlu0.b32.cont [4/16] 0.0, 128
  %405 = vxpose.xlu0.b32.cont [5/16] 0.0, 128
  %406 = vxpose.xlu0.b32.cont [6/16] 0.0, 128
  %407 = vxpose.xlu0.b32.cont [7/16] 0.0, 128
  %408 = vxpose.xlu0.b32.cont [8/16] 0.0, 128
  %409 = vxpose.xlu0.b32.cont [9/16] 0.0, 128
  %410 = vxpose.xlu0.b32.cont [10/16] 0.0, 128
  %411 = vxpose.xlu0.b32.cont [11/16] 0.0, 128
  %412 = vxpose.xlu0.b32.cont [12/16] 0.0, 128
  %413 = vxpose.xlu0.b32.cont [13/16] 0.0, 128
  %414 = vxpose.xlu0.b32.cont [14/16] 0.0, 128
  %415 = vxpose.xlu0.b32.cont [15/16] 0.0, 128
  %416 = vxpose.xlu0.b32.end [16/16] 0.0, 128
  %v417 = vpop.trf.xlu0
  %v418 = vpop.trf.xlu0
  %v419 = vpop.trf.xlu0
  %v420 = vpop.trf.xlu0
  %v421 = vpop.trf.xlu0
  %v422 = vpop.trf.xlu0
  %v423 = vpop.trf.xlu0
  %v424 = vpop.trf.xlu0
  %v425 = vpop.trf.xlu0
  %v426 = vpop.trf.xlu0
  %v427 = vpop.trf.xlu0
  %v428 = vpop.trf.xlu0
  %v429 = vpop.trf.xlu0
  %v430 = vpop.trf.xlu0
  %v431 = vpop.trf.xlu0
  %v432 = vpop.trf.xlu0
  %v433 = vld [vmem:[#allocation3] sm:$0x1]
  %v435 = vperm.slane %v433, 0
  %436 = vset.pattern.permute.xlu0 0
  %437 = vperm.xlu0 %436, %v435
  %v438 = vpop.permute.xlu0 %437
  %v440 = vadd.f32 %v417, %v438
  %vm441 = vcmask 64512
  %442 = vst.msk [vmem:[%s7] sm:$0xff] %vm441, %v440
  // Predicated region
  $region30: #{rnn_forward.1} parent=0 // pred_check
    _
  $region31: #{rnn_forward.1} parent=0 // pred_check_branch
    %444 = sbr.rel (0) target = $region33
  $region32: #{rnn_forward.1} parent=0 // pred_region
    _
  $region33: #{rnn_forward.1} parent=0 // pred_fallthru
    _
  // Predicated region
  $region34: #{rnn_forward.1} parent=0 // pred_check
    _
  $region35: #{rnn_forward.1} parent=0 // pred_check_branch
    %446 = sbr.rel (0) target = $region37
  $region36: #{rnn_forward.1} parent=0 // pred_region
    _
  $region37: #{rnn_forward.1} parent=0 // pred_fallthru
    _
  // Predicated region
  $region38: #{rnn_forward.1} parent=0 // pred_check
    _
  $region39: #{rnn_forward.1} parent=0 // pred_check_branch
    %448 = sbr.rel (0) target = $region41
  $region40: #{rnn_forward.1} parent=0 // pred_region
    _
  $region41: #{rnn_forward.1} parent=0 // pred_fallthru
    _
  // Predicated region
  $region42: #{rnn_forward.1} parent=0 // pred_check
    _
  $region43: #{rnn_forward.1} parent=0 // pred_check_branch
    %450 = sbr.rel (0) target = $region45
  $region44: #{rnn_forward.1} parent=0 // pred_region
    _
  $region45: #{rnn_forward.1} parent=0 // pred_fallthru
    _

</llo_original>
